<compile_context>
chip_gen: v7x
topology: tpu7x:2x2x1
jax: 0.10.0
libtpu: 0.0.40
codegen_flags: <defaults>
</compile_context>

<pallas_src>
import numpy as np
import jax
import jax.numpy as jnp
from jax.experimental import pallas as pl
from jax.experimental.pallas import tpu as pltpu

GRID = 8        # grid_size implied by Linear(64, out_dim): 16 * (GRID/4)^2 == 64
OUT_DIM = 80
EPS = 1e-5
LANE = 128      # TPU lane width; the FC output is zero-padded to this


def _round_up(x, m):
    return (x + m - 1) // m * m


# ------------------------------ Pallas kernel ------------------------------- #

def _grid_encoder_kernel(x_ref, w1_ref, b1_ref, w2_ref, b2_ref, wf_ref, bf_ref, o_ref):
    """One batch tile of the full GridEncoder forward; all intermediates stay in vregs.

    x_ref : (BM, 64)   bf16  flattened 8x8 images
    w1_ref: (64, 512)  bf16  conv1(+BN) as matmul; lanes = (q<4 | p<16 | c<8)
    b1_ref: (1, 512)   f32
    w2_ref: (128, 512) bf16  conv2(+BN) as matmul; lanes = (q2<4 | p2<4 | c2 padded to 32)
    b2_ref: (1, 512)   f32
    wf_ref: (128, 128) bf16  Linear with NCHW-flatten permutation + lane padding folded in
    bf_ref: (1, 128)   f32
    o_ref : (BM, 128)  f32   (first out_dim lanes valid)
    """
    # Stage 1: conv1 + folded BN + ReLU; 2x2 max-pool = max over 128-aligned lane slices.
    z1 = jnp.dot(x_ref[...], w1_ref[...], preferred_element_type=jnp.float32)
    z1 = jnp.maximum(z1 + b1_ref[...], 0.0)                                  # (BM, 512)
    h1 = jnp.maximum(jnp.maximum(z1[:, 0:128], z1[:, 128:256]),
                     jnp.maximum(z1[:, 256:384], z1[:, 384:512]))            # (BM, 128)

    # Stage 2: conv2 + folded BN + ReLU + 2x2 max-pool, same lane-packed trick.
    z2 = jnp.dot(h1.astype(jnp.bfloat16), w2_ref[...],
                 preferred_element_type=jnp.float32)
    z2 = jnp.maximum(z2 + b2_ref[...], 0.0)                                  # (BM, 512)
    h2 = jnp.maximum(jnp.maximum(z2[:, 0:128], z2[:, 128:256]),
                     jnp.maximum(z2[:, 256:384], z2[:, 384:512]))            # (BM, 128)

    # Flatten (permutation folded into wf) + Linear; output block is lane-dense (128).
    o_ref[...] = (jnp.dot(h2.astype(jnp.bfloat16), wf_ref[...],
                          preferred_element_type=jnp.float32) + bf_ref[...])


def _fused_call(x, w1, b1, w2, b2, wf, bf, *, bm):
    n_pad = x.shape[0]
    const = lambda i: (0, 0)          # weights stay resident across grid steps
    in_specs = [
        pl.BlockSpec((bm, GRID * GRID), lambda i: (i, 0)),
        pl.BlockSpec(w1.shape, const),
        pl.BlockSpec(b1.shape, const),
        pl.BlockSpec(w2.shape, const),
        pl.BlockSpec(b2.shape, const),
        pl.BlockSpec(wf.shape, const),
        pl.BlockSpec(bf.shape, const),
    ]
    return pl.pallas_call(
        _grid_encoder_kernel,
        out_shape=jax.ShapeDtypeStruct((n_pad, LANE), jnp.float32),
        grid_spec=pltpu.PrefetchScalarGridSpec(
            num_scalar_prefetch=0,
            grid=(n_pad // bm,),
            in_specs=in_specs,
            out_specs=pl.BlockSpec((bm, LANE), lambda i: (i, 0)),
        ),
        compiler_params=pltpu.CompilerParams(
            dimension_semantics=("parallel",)),
    )(x, w1, b1, w2, b2, wf, bf)


# ------------------------------ parameters --------------------------------- #

def init_params(key, out_dim=OUT_DIM):
    ks = jax.random.split(key, 10)
    return {
        # Conv2d(1, 8, 3, padding=1)
        "w1": jax.random.normal(ks[0], (8, 1, 3, 3), jnp.float32) * 0.2,
        "b1": jax.random.normal(ks[1], (8,), jnp.float32) * 0.05,
        # BatchNorm2d(8)
        "g1": 1.0 + 0.1 * jax.random.normal(ks[2], (8,), jnp.float32),
        "be1": 0.05 * jax.random.normal(ks[3], (8,), jnp.float32),
        "rm1": jnp.zeros((8,), jnp.float32),
        "rv1": jnp.ones((8,), jnp.float32),
        # Conv2d(8, 16, 3, padding=1)
        "w2": jax.random.normal(ks[4], (16, 8, 3, 3), jnp.float32) * 0.1,
        "b2": jax.random.normal(ks[5], (16,), jnp.float32) * 0.05,
        # BatchNorm2d(16)
        "g2": 1.0 + 0.1 * jax.random.normal(ks[6], (16,), jnp.float32),
        "be2": 0.05 * jax.random.normal(ks[7], (16,), jnp.float32),
        "rm2": jnp.zeros((16,), jnp.float32),
        "rv2": jnp.ones((16,), jnp.float32),
        # Linear(64, out_dim)  (PyTorch stores weight as (out_dim, 64))
        "wfc": jax.random.normal(ks[8], (out_dim, 64), jnp.float32) * 0.05,
        "bfc": jax.random.normal(ks[9], (out_dim,), jnp.float32) * 0.05,
    }


def prepare_params(params):
    """One-time host-side constant prep (NOT jitted).

    Folds eval-mode BatchNorm into the conv weights, scatters each conv into a dense
    'conv as matmul' weight whose output-lane order makes the 2x2 max-pool a
    128-lane-aligned slice max, folds the NCHW flatten permutation and the
    out_dim -> 128 lane padding into the FC weight, and casts matmul weights to bf16.
    """
    w1 = np.asarray(params["w1"], np.float32)
    w2 = np.asarray(params["w2"], np.float32)
    wfc = np.asarray(params["wfc"], np.float32)
    out_dim = wfc.shape[0]
    assert w1.shape == (8, 1, 3, 3) and w2.shape == (16, 8, 3, 3)
    assert wfc.shape == (out_dim, 64) and out_dim <= LANE
    assert GRID == 8, "lane-packing constants are derived for grid_size == 8"

    s1 = np.asarray(params["g1"], np.float32) / np.sqrt(np.asarray(params["rv1"], np.float32) + EPS)
    bb1 = ((np.asarray(params["b1"], np.float32) - np.asarray(params["rm1"], np.float32)) * s1
           + np.asarray(params["be1"], np.float32))
    s2 = np.asarray(params["g2"], np.float32) / np.sqrt(np.asarray(params["rv2"], np.float32) + EPS)
    bb2 = ((np.asarray(params["b2"], np.float32) - np.asarray(params["rm2"], np.float32)) * s2
           + np.asarray(params["be2"], np.float32))

    # Stage 1: 64 input pixels -> lanes (q<4 | pooled pos p<16 | channel c<8) = 512.
    W1 = np.zeros((GRID * GRID, 4 * LANE), np.float32)
    B1 = np.zeros((1, 4 * LANE), np.float32)
    for p in range(16):
        py, px = divmod(p, 4)
        for q in range(4):
            qy, qx = divmod(q, 2)
            oy, ox = 2 * py + qy, 2 * px + qx            # conv-1 output position (8x8)
            for c in range(8):
                lane = q * LANE + p * 8 + c
                B1[0, lane] = bb1[c]
                for dy in range(3):
                    iy = oy + dy - 1
                    if not 0 <= iy < GRID:
                        continue                          # zero padding -> no tap
                    for dx in range(3):
                        ix = ox + dx - 1
                        if 0 <= ix < GRID:
                            W1[iy * GRID + ix, lane] = w1[c, 0, dy, dx] * s1[c]

    # Stage 2: input lanes (4x4 pos | ci<8) = 128 -> lanes (q2<4 | p2<4 | c2 padded to 32).
    W2 = np.zeros((LANE, 4 * LANE), np.float32)
    B2 = np.zeros((1, 4 * LANE), np.float32)
    for p2 in range(4):
        p2y, p2x = divmod(p2, 2)
        for q2 in range(4):
            q2y, q2x = divmod(q2, 2)
            oy, ox = 2 * p2y + q2y, 2 * p2x + q2x        # conv-2 output position (4x4)
            for c2 in range(16):
                lane = q2 * LANE + p2 * 32 + c2
                B2[0, lane] = bb2[c2]
                for dy in range(3):
                    iy = oy + dy - 1
                    if not 0 <= iy < 4:
                        continue
                    for dx in range(3):
                        ix = ox + dx - 1
                        if not 0 <= ix < 4:
                            continue
                        for ci in range(8):
                            W2[(iy * 4 + ix) * 8 + ci, lane] = w2[c2, ci, dy, dx] * s2[c2]

    # Linear: fold NCHW flatten permutation (flat idx = c2*4 + p2) and pad to 128 lanes.
    WF = np.zeros((LANE, LANE), np.float32)
    BF = np.zeros((1, LANE), np.float32)
    BF[0, :out_dim] = np.asarray(params["bfc"], np.float32)
    for p2 in range(4):
        for c2 in range(16):
            WF[p2 * 32 + c2, :out_dim] = wfc[:, c2 * 4 + p2]

    return {
        "w1": jnp.asarray(W1, jnp.bfloat16), "b1": jnp.asarray(B1, jnp.float32),
        "w2": jnp.asarray(W2, jnp.bfloat16), "b2": jnp.asarray(B2, jnp.float32),
        "wf": jnp.asarray(WF, jnp.bfloat16), "bf": jnp.asarray(BF, jnp.float32),
        "out_dim": out_dim,
    }


# -------------------------------- forward ---------------------------------- #

def grid_encoder_forward(prep, grid_nchw, *, block_rows=256):
    """grid_nchw: (N, 1, 8, 8) -> (N, out_dim).  Matches GridEncoder.forward (eval BN)."""
    n = grid_nchw.shape[0]
    assert grid_nchw.shape[1:] == (1, GRID, GRID)
    x = grid_nchw.reshape(n, GRID * GRID).astype(jnp.bfloat16)   # lane-dense HBM input
    bm = min(block_rows, _round_up(n, 16))                        # batch tile, mult. of 16
    n_pad = _round_up(n, bm)
    if n_pad != n:
        x = jnp.pad(x, ((0, n_pad - n), (0, 0)))
    out = _fused_call(x, prep["w1"], prep["b1"], prep["w2"], prep["b2"],
                      prep["wf"], prep["bf"], bm=bm)
    return out[:n, :prep["out_dim"]]


# --------------------------- pure-JAX reference ----------------------------- #

def grid_encoder_reference(params, grid_nchw):
    """Non-Pallas reference matching PyTorch GridEncoder (eval-mode BN)."""
    def block(x_nhwc, w, b, g, be, rm, rv):
        n, h, wd, ci = x_nhwc.shape
        co = w.shape[0]
        xp = jnp.pad(x_nhwc, ((0, 0), (1, 1), (1, 1), (0, 0)))
        pat = jnp.stack([xp[:, dy:dy + h, dx:dx + wd, :]
                         for dy in range(3) for dx in range(3)], axis=3)   # (n,h,w,9,ci)
        wm = jnp.transpose(w, (2, 3, 1, 0)).reshape(9 * ci, co)
        z = pat.reshape(n, h, wd, 9 * ci) @ wm + b
        z = (z - rm) / jnp.sqrt(rv + EPS) * g + be
        z = jnp.maximum(z, 0.0)
        return z.reshape(n, h // 2, 2, wd // 2, 2, co).max(axis=(2, 4))

    x = grid_nchw[:, 0].astype(jnp.float32)[..., None]                     # (N,8,8,1)
    h1 = block(x, params["w1"], params["b1"], params["g1"], params["be1"],
               params["rm1"], params["rv1"])
    h2 = block(h1, params["w2"], params["b2"], params["g2"], params["be2"],
               params["rm2"], params["rv2"])
    flat = jnp.transpose(h2, (0, 3, 1, 2)).reshape(h2.shape[0], -1)        # NCHW flatten
    return flat @ params["wfc"].T + params["bfc"]


if __name__ == "__main__":
    key = jax.random.PRNGKey(0)
    kp, kx = jax.random.split(key)
    params = init_params(kp)
    prep = prepare_params(params)

    # (batch * sequence_length, 1, grid_size, grid_size) = (2*4, 1, 8, 8)
    grid_obs = jax.random.normal(kx, (8, 1, GRID, GRID), jnp.float32)

    fwd = jax.jit(lambda g: grid_encoder_forward(prep, g))
    out = jax.block_until_ready(fwd(grid_obs))
    assert out.shape == (8, OUT_DIM) and out.dtype == jnp.float32

    ref = jax.block_until_ready(jax.jit(grid_encoder_reference)(params, grid_obs))
    # Tolerance accounts for the deliberate bf16 matmul inputs (f32 accumulation).
    max_err = float(jnp.max(jnp.abs(out - ref)))
    assert jnp.allclose(out, ref, rtol=2e-2, atol=2e-2), max_err

    print("KERNEL_OK")
</pallas_src>

<mosaic_0001>
module attributes {stable_mosaic.version = 11 : i64} {
  func.func @_grid_encoder_kernel(%arg0: i32, %arg1: memref<16x64xbf16, #tpu.memory_space<vmem>>, %arg2: memref<64x512xbf16, #tpu.memory_space<vmem>>, %arg3: memref<1x512xf32, #tpu.memory_space<vmem>>, %arg4: memref<128x512xbf16, #tpu.memory_space<vmem>>, %arg5: memref<1x512xf32, #tpu.memory_space<vmem>>, %arg6: memref<128x128xbf16, #tpu.memory_space<vmem>>, %arg7: memref<1x128xf32, #tpu.memory_space<vmem>>, %arg8: memref<16x128xf32, #tpu.memory_space<vmem>>) attributes {dimension_semantics = [#tpu.dimension_semantics<parallel>], iteration_bounds = array<i64: 1>, scalar_prefetch = 0 : i64, scratch_operands = 0 : i64, tpu.core_type = #tpu.core_type<tc>, window_params = [{transform_indices = @transform_0, window_bounds = array<i64: 16, 64>}, {pipeline_mode = #tpu.pipeline_mode<synchronous>, transform_indices = @transform_1, window_bounds = array<i64: 64, 512>}, {pipeline_mode = #tpu.pipeline_mode<synchronous>, transform_indices = @transform_2, window_bounds = array<i64: 1, 512>}, {pipeline_mode = #tpu.pipeline_mode<synchronous>, transform_indices = @transform_3, window_bounds = array<i64: 128, 512>}, {pipeline_mode = #tpu.pipeline_mode<synchronous>, transform_indices = @transform_4, window_bounds = array<i64: 1, 512>}, {pipeline_mode = #tpu.pipeline_mode<synchronous>, transform_indices = @transform_5, window_bounds = array<i64: 128, 128>}, {pipeline_mode = #tpu.pipeline_mode<synchronous>, transform_indices = @transform_6, window_bounds = array<i64: 1, 128>}, {transform_indices = @transform_7, window_bounds = array<i64: 16, 128>}]} {
    %c0 = arith.constant 0 : index
    %c0_0 = arith.constant 0 : index
    %0 = vector.load %arg1[%c0, %c0_0] : memref<16x64xbf16, #tpu.memory_space<vmem>>, vector<16x64xbf16>
    %c0_1 = arith.constant 0 : index
    %c0_2 = arith.constant 0 : index
    %1 = vector.load %arg2[%c0_1, %c0_2] : memref<64x512xbf16, #tpu.memory_space<vmem>>, vector<64x512xbf16>
    %cst = arith.constant dense<0.000000e+00> : vector<16x512xf32>
    %2 = tpu.matmul %0, %1, %cst {dimension_numbers = #tpu.dot_dimension_numbers<[1], [0], [0], [1], [0, 0, 1, 1], [], []>} : vector<16x64xbf16>, vector<64x512xbf16>, vector<16x512xf32> -> vector<16x512xf32>
    %c0_3 = arith.constant 0 : index
    %c0_4 = arith.constant 0 : index
    %3 = vector.load %arg3[%c0_3, %c0_4] : memref<1x512xf32, #tpu.memory_space<vmem>>, vector<1x512xf32>
    %4 = vector.broadcast %3 : vector<1x512xf32> to vector<16x512xf32>
    %5 = arith.addf %2, %4 : vector<16x512xf32>
    %cst_5 = arith.constant 0.000000e+00 : f32
    %6 = vector.broadcast %cst_5 : f32 to vector<16x512xf32>
    %7 = arith.maximumf %5, %6 : vector<16x512xf32>
    %8 = vector.extract_strided_slice %7 {offsets = [0, 0], sizes = [16, 128], strides = [1, 1]} : vector<16x512xf32> to vector<16x128xf32>
    %9 = vector.extract_strided_slice %7 {offsets = [0, 128], sizes = [16, 128], strides = [1, 1]} : vector<16x512xf32> to vector<16x128xf32>
    %10 = arith.maximumf %8, %9 : vector<16x128xf32>
    %11 = vector.extract_strided_slice %7 {offsets = [0, 256], sizes = [16, 128], strides = [1, 1]} : vector<16x512xf32> to vector<16x128xf32>
    %12 = vector.extract_strided_slice %7 {offsets = [0, 384], sizes = [16, 128], strides = [1, 1]} : vector<16x512xf32> to vector<16x128xf32>
    %13 = arith.maximumf %11, %12 : vector<16x128xf32>
    %14 = arith.maximumf %10, %13 : vector<16x128xf32>
    %15 = arith.truncf %14 : vector<16x128xf32> to vector<16x128xbf16>
    %c0_6 = arith.constant 0 : index
    %c0_7 = arith.constant 0 : index
    %16 = vector.load %arg4[%c0_6, %c0_7] : memref<128x512xbf16, #tpu.memory_space<vmem>>, vector<128x512xbf16>
    %cst_8 = arith.constant dense<0.000000e+00> : vector<16x512xf32>
    %17 = tpu.matmul %15, %16, %cst_8 {dimension_numbers = #tpu.dot_dimension_numbers<[1], [0], [0], [1], [0, 0, 1, 1], [], []>} : vector<16x128xbf16>, vector<128x512xbf16>, vector<16x512xf32> -> vector<16x512xf32>
    %c0_9 = arith.constant 0 : index
    %c0_10 = arith.constant 0 : index
    %18 = vector.load %arg5[%c0_9, %c0_10] : memref<1x512xf32, #tpu.memory_space<vmem>>, vector<1x512xf32>
    %19 = vector.broadcast %18 : vector<1x512xf32> to vector<16x512xf32>
    %20 = arith.addf %17, %19 : vector<16x512xf32>
    %cst_11 = arith.constant 0.000000e+00 : f32
    %21 = vector.broadcast %cst_11 : f32 to vector<16x512xf32>
    %22 = arith.maximumf %20, %21 : vector<16x512xf32>
    %23 = vector.extract_strided_slice %22 {offsets = [0, 0], sizes = [16, 128], strides = [1, 1]} : vector<16x512xf32> to vector<16x128xf32>
    %24 = vector.extract_strided_slice %22 {offsets = [0, 128], sizes = [16, 128], strides = [1, 1]} : vector<16x512xf32> to vector<16x128xf32>
    %25 = arith.maximumf %23, %24 : vector<16x128xf32>
    %26 = vector.extract_strided_slice %22 {offsets = [0, 256], sizes = [16, 128], strides = [1, 1]} : vector<16x512xf32> to vector<16x128xf32>
    %27 = vector.extract_strided_slice %22 {offsets = [0, 384], sizes = [16, 128], strides = [1, 1]} : vector<16x512xf32> to vector<16x128xf32>
    %28 = arith.maximumf %26, %27 : vector<16x128xf32>
    %29 = arith.maximumf %25, %28 : vector<16x128xf32>
    %30 = arith.truncf %29 : vector<16x128xf32> to vector<16x128xbf16>
    %c0_12 = arith.constant 0 : index
    %c0_13 = arith.constant 0 : index
    %31 = vector.load %arg6[%c0_12, %c0_13] : memref<128x128xbf16, #tpu.memory_space<vmem>>, vector<128x128xbf16>
    %cst_14 = arith.constant dense<0.000000e+00> : vector<16x128xf32>
    %32 = tpu.matmul %30, %31, %cst_14 {dimension_numbers = #tpu.dot_dimension_numbers<[1], [0], [0], [1], [0, 0, 1, 1], [], []>} : vector<16x128xbf16>, vector<128x128xbf16>, vector<16x128xf32> -> vector<16x128xf32>
    %c0_15 = arith.constant 0 : index
    %c0_16 = arith.constant 0 : index
    %33 = vector.load %arg7[%c0_15, %c0_16] : memref<1x128xf32, #tpu.memory_space<vmem>>, vector<1x128xf32>
    %34 = vector.broadcast %33 : vector<1x128xf32> to vector<16x128xf32>
    %35 = arith.addf %32, %34 : vector<16x128xf32>
    %c0_17 = arith.constant 0 : index
    %c0_18 = arith.constant 0 : index
    %36 = vector.load %arg8[%c0_17, %c0_18] : memref<16x128xf32, #tpu.memory_space<vmem>>, vector<16x128xf32>
    tpu.vector_store %arg8[%c0_17, %c0_18], %35 {strides = array<i32>} : memref<16x128xf32, #tpu.memory_space<vmem>>, vector<16x128xf32>,
    return
  }
  func.func @transform_0(%arg0: i32) -> (i32, i32) {
    %c0_i32 = arith.constant 0 : i32
    %c0_i32_0 = arith.constant 0 : i32
    return %arg0, %c0_i32 : i32, i32
  }
  func.func @transform_1(%arg0: i32) -> (i32, i32) {
    %c0_i32 = arith.constant 0 : i32
    %c0_i32_0 = arith.constant 0 : i32
    %c0_i32_1 = arith.constant 0 : i32
    return %c0_i32, %c0_i32_0 : i32, i32
  }
  func.func @transform_2(%arg0: i32) -> (i32, i32) {
    %c0_i32 = arith.constant 0 : i32
    %c0_i32_0 = arith.constant 0 : i32
    %c0_i32_1 = arith.constant 0 : i32
    return %c0_i32, %c0_i32_0 : i32, i32
  }
  func.func @transform_3(%arg0: i32) -> (i32, i32) {
    %c0_i32 = arith.constant 0 : i32
    %c0_i32_0 = arith.constant 0 : i32
    %c0_i32_1 = arith.constant 0 : i32
    return %c0_i32, %c0_i32_0 : i32, i32
  }
  func.func @transform_4(%arg0: i32) -> (i32, i32) {
    %c0_i32 = arith.constant 0 : i32
    %c0_i32_0 = arith.constant 0 : i32
    %c0_i32_1 = arith.constant 0 : i32
    return %c0_i32, %c0_i32_0 : i32, i32
  }
  func.func @transform_5(%arg0: i32) -> (i32, i32) {
    %c0_i32 = arith.constant 0 : i32
    %c0_i32_0 = arith.constant 0 : i32
    %c0_i32_1 = arith.constant 0 : i32
    return %c0_i32, %c0_i32_0 : i32, i32
  }
  func.func @transform_6(%arg0: i32) -> (i32, i32) {
    %c0_i32 = arith.constant 0 : i32
    %c0_i32_0 = arith.constant 0 : i32
    %c0_i32_1 = arith.constant 0 : i32
    return %c0_i32, %c0_i32_0 : i32, i32
  }
  func.func @transform_7(%arg0: i32) -> (i32, i32) {
    %c0_i32 = arith.constant 0 : i32
    %c0_i32_0 = arith.constant 0 : i32
    return %arg0, %c0_i32 : i32, i32
  }
}

</mosaic_0001>

<llo_original>
// kernel: _lambda_.1
$region0: #{_lambda_.1}
  #allocation0 [shape = 'u32[]', space=smem, size = 0x4, offset = 0x4, fixed_abs, tag = 'smem constant byte address 0x4 - core index']
  #allocation1 [shape = 'u32[144,128]{1,0:T(1,128)}', space=vmem, size = 0x12000, scoped, tag = 'internal scratch']
  %s0 = inlined_call_operand.vmem [shape: bf16[16,64], index: 0, kind: input, shape index: {}]
  %s1 = inlined_call_operand.vmem [shape: bf16[64,512], index: 1, kind: input, shape index: {}]
  %s2 = inlined_call_operand.vmem [shape: f32[1,512], index: 2, kind: input, shape index: {}]
  %s3 = inlined_call_operand.vmem [shape: bf16[128,512], index: 3, kind: input, shape index: {}]
  %s4 = inlined_call_operand.vmem [shape: f32[1,512], index: 4, kind: input, shape index: {}]
  %s5 = inlined_call_operand.vmem [shape: bf16[128,128], index: 5, kind: input, shape index: {}]
  %s6 = inlined_call_operand.vmem [shape: f32[1,128], index: 6, kind: input, shape index: {}]
  %s7 = inlined_call_operand.vmem [shape: f32[16,128], index: 7, kind: output, shape index: {}]
  %s8 = sld [smem:[#allocation0]]
  $region38: #{_lambda_.1} parent=0
    _
  %s10 = ssub.s32 1, %s8
  %s11 = scalar_select 0, %s10, %s8
  // Predicated region
  $region2: #{_lambda_.1} parent=0 // pred_check
    _
  $region3: #{_lambda_.1} parent=0 // pred_check_branch
    %13 = sbr.rel (0) target = $region5
  $region4: #{_lambda_.1} parent=0 // pred_region
    _
  $region5: #{_lambda_.1} parent=0 // pred_fallthru
    _
  // Predicated region
  $region6: #{_lambda_.1} parent=0 // pred_check
    _
  $region7: #{_lambda_.1} parent=0 // pred_check_branch
    %15 = sbr.rel (0) target = $region9
  $region8: #{_lambda_.1} parent=0 // pred_region
    _
  $region9: #{_lambda_.1} parent=0 // pred_fallthru
    _
  // Predicated region
  $region10: #{_lambda_.1} parent=0 // pred_check
    _
  $region11: #{_lambda_.1} parent=0 // pred_check_branch
    %17 = sbr.rel (0) target = $region13
  $region12: #{_lambda_.1} parent=0 // pred_region
    _
  $region13: #{_lambda_.1} parent=0 // pred_fallthru
    _
  // Predicated region
  $region14: #{_lambda_.1} parent=0 // pred_check
    _
  $region15: #{_lambda_.1} parent=0 // pred_check_branch
    %19 = sbr.rel (0) target = $region17
  $region16: #{_lambda_.1} parent=0 // pred_region
    _
  $region17: #{_lambda_.1} parent=0 // pred_fallthru
    _
  // Predicated region
  $region18: #{_lambda_.1} parent=0 // pred_check
    _
  $region19: #{_lambda_.1} parent=0 // pred_check_branch
    %21 = sbr.rel (0) target = $region21
  $region20: #{_lambda_.1} parent=0 // pred_region
    _
  $region21: #{_lambda_.1} parent=0 // pred_fallthru
    _
  // Predicated region
  $region22: #{_lambda_.1} parent=0 // pred_check
    _
  $region23: #{_lambda_.1} parent=0 // pred_check_branch
    %23 = sbr.rel (0) target = $region25
  $region24: #{_lambda_.1} parent=0 // pred_region
    _
  $region25: #{_lambda_.1} parent=0 // pred_fallthru
    _
  // Predicated region
  $region26: #{_lambda_.1} parent=0 // pred_check
    _
  $region27: #{_lambda_.1} parent=0 // pred_check_branch
    %25 = sbr.rel (0) target = $region29
  $region28: #{_lambda_.1} parent=0 // pred_region
    _
  $region29: #{_lambda_.1} parent=0 // pred_fallthru
    _
  %v27 = vld [vmem:[%s0] sm:$0xf]
  %v28 = vld [vmem:[%s0 + $0x4] sm:$0xf]
  %v29 = vld [vmem:[%s1] sm:$0xff]
  %v30 = vld [vmem:[%s1 + $0x8] sm:$0xff]
  %v31 = vld [vmem:[%s1 + $0x10] sm:$0xff]
  %v32 = vld [vmem:[%s1 + $0x18] sm:$0xff]
  %v33 = vld [vmem:[%s1 + $0x20] sm:$0xff]
  %v34 = vld [vmem:[%s1 + $0x28] sm:$0xff]
  %v35 = vld [vmem:[%s1 + $0x30] sm:$0xff]
  %v36 = vld [vmem:[%s1 + $0x38] sm:$0xff]
  %v37 = vld [vmem:[%s1 + $0x40] sm:$0xff]
  %v38 = vld [vmem:[%s1 + $0x48] sm:$0xff]
  %v39 = vld [vmem:[%s1 + $0x50] sm:$0xff]
  %v40 = vld [vmem:[%s1 + $0x58] sm:$0xff]
  %v41 = vld [vmem:[%s1 + $0x60] sm:$0xff]
  %v42 = vld [vmem:[%s1 + $0x68] sm:$0xff]
  %v43 = vld [vmem:[%s1 + $0x70] sm:$0xff]
  %v44 = vld [vmem:[%s1 + $0x78] sm:$0xff]
  %v45 = vld [vmem:[%s2] sm:$0xf]
  %v47 = vlaneseq
  %v48 = vshrl.u32 %v47, 7
  %v49 = vsub.s32 0, %v48
  %v50 = vrot.slane %v45, %v49
  %v51 = vlaneseq
  %v52 = vshrl.u32 %v51, 7
  %v53 = vsub.s32 1, %v52
  %v54 = vrot.slane %v45, %v53
  %v55 = vlaneseq
  %v56 = vshrl.u32 %v55, 7
  %v57 = vsub.s32 2, %v56
  %v58 = vrot.slane %v45, %v57
  %v59 = vlaneseq
  %v60 = vshrl.u32 %v59, 7
  %v61 = vsub.s32 3, %v60
  %v62 = vrot.slane %v45, %v61
  %v69 = vunpack.c.l.b16 %v27
  %v70 = vunpack.c.l.b16 %v28
  %v71 = vpack.c.b16 %v70, %v69
  %v88 = vunpack.c.l.b16 %v29
  %v89 = vunpack.c.h.b16 %v29
  %v90 = vunpack.c.l.b16 %v30
  %v91 = vunpack.c.h.b16 %v30
  %v92 = vunpack.c.l.b16 %v31
  %v93 = vunpack.c.h.b16 %v31
  %v94 = vunpack.c.l.b16 %v32
  %v95 = vunpack.c.h.b16 %v32
  %v96 = vunpack.c.l.b16 %v33
  %v97 = vunpack.c.h.b16 %v33
  %v98 = vunpack.c.l.b16 %v34
  %v99 = vunpack.c.h.b16 %v34
  %v100 = vunpack.c.l.b16 %v35
  %v101 = vunpack.c.h.b16 %v35
  %v102 = vunpack.c.l.b16 %v36
  %v103 = vunpack.c.h.b16 %v36
  %v104 = vunpack.c.l.b16 %v37
  %v105 = vunpack.c.h.b16 %v37
  %v106 = vunpack.c.l.b16 %v38
  %v107 = vunpack.c.h.b16 %v38
  %v108 = vunpack.c.l.b16 %v39
  %v109 = vunpack.c.h.b16 %v39
  %v110 = vunpack.c.l.b16 %v40
  %v111 = vunpack.c.h.b16 %v40
  %v112 = vunpack.c.l.b16 %v41
  %v113 = vunpack.c.h.b16 %v41
  %v114 = vunpack.c.l.b16 %v42
  %v115 = vunpack.c.h.b16 %v42
  %v116 = vunpack.c.l.b16 %v43
  %v117 = vunpack.c.h.b16 %v43
  %v118 = vunpack.c.l.b16 %v44
  %v119 = vunpack.c.h.b16 %v44
  %v120 = vpack.c.b16 %v92, %v88
  %v121 = vpack.c.b16 %v93, %v89
  %v122 = vpack.c.b16 %v94, %v90
  %v123 = vpack.c.b16 %v95, %v91
  %v124 = vpack.c.b16 %v100, %v96
  %v125 = vpack.c.b16 %v101, %v97
  %v126 = vpack.c.b16 %v102, %v98
  %v127 = vpack.c.b16 %v103, %v99
  %v128 = vpack.c.b16 %v108, %v104
  %v129 = vpack.c.b16 %v109, %v105
  %v130 = vpack.c.b16 %v110, %v106
  %v131 = vpack.c.b16 %v111, %v107
  %v132 = vpack.c.b16 %v116, %v112
  %v133 = vpack.c.b16 %v117, %v113
  %v134 = vpack.c.b16 %v118, %v114
  %v135 = vpack.c.b16 %v119, %v115
  %vm152 = vcmask 523264
  %v154 = vsel %vm152, %v71, 0
  %156 = vmatprep.subr.bf16.mxu0 %v121
  %157 = vmatpush1.bf16.msra.mxu0 %v120
  %158 = vmatprep.subr.bf16.mxu0 %v125
  %159 = vmatpush1.bf16.msra.mxu0 %v124
  %160 = vmatprep.subr.bf16.mxu0 %v129
  %161 = vmatpush1.bf16.msra.mxu0 %v128
  %162 = vmatprep.subr.bf16.mxu0 %v133
  %163 = vmatpush1.bf16.msra.mxu0 %v132
  %164 = vmatprep.subr.bf16.mxu0 0
  %165 = vmatpush1.bf16.msra.mxu0 0
  %166 = vmatprep.subr.bf16.mxu0 0
  %167 = vmatpush1.bf16.msra.mxu0 0
  %168 = vmatprep.subr.bf16.mxu0 0
  %169 = vmatpush1.bf16.msra.mxu0 0
  %170 = vmatprep.subr.bf16.mxu0 0
  %171 = vmatpush1.bf16.msra.mxu0 0
  %172 = vmatprep.subr.bf16.mxu0 0
  %173 = vmatpush1.bf16.msra.mxu0 0
  %174 = vmatprep.subr.bf16.mxu0 0
  %175 = vmatpush1.bf16.msra.mxu0 0
  %176 = vmatprep.subr.bf16.mxu0 0
  %177 = vmatpush1.bf16.msra.mxu0 0
  %178 = vmatprep.subr.bf16.mxu0 0
  %179 = vmatpush1.bf16.msra.mxu0 0
  %180 = vmatprep.subr.bf16.mxu0 0
  %181 = vmatpush1.bf16.msra.mxu0 0
  %182 = vmatprep.subr.bf16.mxu0 0
  %183 = vmatpush1.bf16.msra.mxu0 0
  %184 = vmatprep.subr.bf16.mxu0 0
  %185 = vmatpush1.bf16.msra.mxu0 0
  %186 = vmatprep.subr.bf16.mxu0 0
  %187 = vmatpush1.bf16.msra.mxu0 0
  %188 = vmatprep.mubr.bf16.mxu0 0
  %189 = vmatmul.mubr.bf16.gmra.mrb[0].mxu0 %v154
  %v190 = vpop.f32.mrb[0].mxu0
  %v191 = vadd.f32 %v50, %v190
  %v192 = vpop.f32.mrb[0].mxu0
  %v193 = vadd.f32 %v54, %v192
  %v194 = vpop.f32.mrb[0].mxu0
  %v195 = vadd.f32 %v50, %v194
  %v196 = vpop.f32.mrb[0].mxu0
  %v197 = vadd.f32 %v54, %v196
  %198 = vdwg.mxu0
  %199 = vmatprep.subr.bf16.mxu0 %v123
  %200 = vmatpush1.bf16.msra.mxu0 %v122
  %201 = vmatprep.subr.bf16.mxu0 %v127
  %202 = vmatpush1.bf16.msra.mxu0 %v126
  %203 = vmatprep.subr.bf16.mxu0 %v131
  %204 = vmatpush1.bf16.msra.mxu0 %v130
  %205 = vmatprep.subr.bf16.mxu0 %v135
  %206 = vmatpush1.bf16.msra.mxu0 %v134
  %207 = vmatprep.subr.bf16.mxu0 0
  %208 = vmatpush1.bf16.msra.mxu0 0
  %209 = vmatprep.subr.bf16.mxu0 0
  %210 = vmatpush1.bf16.msra.mxu0 0
  %211 = vmatprep.subr.bf16.mxu0 0
  %212 = vmatpush1.bf16.msra.mxu0 0
  %213 = vmatprep.subr.bf16.mxu0 0
  %214 = vmatpush1.bf16.msra.mxu0 0
  %215 = vmatprep.subr.bf16.mxu0 0
  %216 = vmatpush1.bf16.msra.mxu0 0
  %217 = vmatprep.subr.bf16.mxu0 0
  %218 = vmatpush1.bf16.msra.mxu0 0
  %219 = vmatprep.subr.bf16.mxu0 0
  %220 = vmatpush1.bf16.msra.mxu0 0
  %221 = vmatprep.subr.bf16.mxu0 0
  %222 = vmatpush1.bf16.msra.mxu0 0
  %223 = vmatprep.subr.bf16.mxu0 0
  %224 = vmatpush1.bf16.msra.mxu0 0
  %225 = vmatprep.subr.bf16.mxu0 0
  %226 = vmatpush1.bf16.msra.mxu0 0
  %227 = vmatprep.subr.bf16.mxu0 0
  %228 = vmatpush1.bf16.msra.mxu0 0
  %229 = vmatprep.subr.bf16.mxu0 0
  %230 = vmatpush1.bf16.msra.mxu0 0
  %231 = vmatprep.mubr.bf16.mxu0 0
  %232 = vmatmul.mubr.bf16.gmra.mrb[0].mxu0 %v154
  %v233 = vpop.f32.mrb[0].mxu0
  %v234 = vadd.f32 %v58, %v233
  %v235 = vpop.f32.mrb[0].mxu0
  %v236 = vadd.f32 %v62, %v235
  %v237 = vpop.f32.mrb[0].mxu0
  %v238 = vadd.f32 %v58, %v237
  %v239 = vpop.f32.mrb[0].mxu0
  %v240 = vadd.f32 %v62, %v239
  %241 = vdwg.mxu0
  %v242 = vmax.f32 %v191, 0.0
  %v243 = vmax.f32 %v193, 0.0
  %v244 = vmax.f32 %v234, 0.0
  %v245 = vmax.f32 %v236, 0.0
  %v246 = vmax.f32 %v195, 0.0
  %v247 = vmax.f32 %v197, 0.0
  %v248 = vmax.f32 %v238, 0.0
  %v249 = vmax.f32 %v240, 0.0
  %v250 = vmax.f32 %v242, %v243
  %v251 = vmax.f32 %v246, %v247
  %v252 = vmax.f32 %v244, %v245
  %v253 = vmax.f32 %v248, %v249
  %v254 = vmax.f32 %v250, %v252
  %v255 = vmax.f32 %v251, %v253
  %v256 = vpack.c.bf16 %v255, %v254
  %v257 = vld [vmem:[%s3] sm:$0xff]
  %v258 = vld [vmem:[%s3 + $0x8] sm:$0xff]
  %v259 = vld [vmem:[%s3 + $0x10] sm:$0xff]
  %v260 = vld [vmem:[%s3 + $0x18] sm:$0xff]
  %v261 = vld [vmem:[%s3 + $0x20] sm:$0xff]
  %v262 = vld [vmem:[%s3 + $0x28] sm:$0xff]
  %v263 = vld [vmem:[%s3 + $0x30] sm:$0xff]
  %v264 = vld [vmem:[%s3 + $0x38] sm:$0xff]
  %v265 = vld [vmem:[%s3 + $0x40] sm:$0xff]
  %v266 = vld [vmem:[%s3 + $0x48] sm:$0xff]
  %v267 = vld [vmem:[%s3 + $0x50] sm:$0xff]
  %v268 = vld [vmem:[%s3 + $0x58] sm:$0xff]
  %v269 = vld [vmem:[%s3 + $0x60] sm:$0xff]
  %v270 = vld [vmem:[%s3 + $0x68] sm:$0xff]
  %v271 = vld [vmem:[%s3 + $0x70] sm:$0xff]
  %v272 = vld [vmem:[%s3 + $0x78] sm:$0xff]
  %v273 = vld [vmem:[%s3 + $0x80] sm:$0xff]
  %v274 = vld [vmem:[%s3 + $0x88] sm:$0xff]
  %v275 = vld [vmem:[%s3 + $0x90] sm:$0xff]
  %v276 = vld [vmem:[%s3 + $0x98] sm:$0xff]
  %v277 = vld [vmem:[%s3 + $0xa0] sm:$0xff]
  %v278 = vld [vmem:[%s3 + $0xa8] sm:$0xff]
  %v279 = vld [vmem:[%s3 + $0xb0] sm:$0xff]
  %v280 = vld [vmem:[%s3 + $0xb8] sm:$0xff]
  %v281 = vld [vmem:[%s3 + $0xc0] sm:$0xff]
  %v282 = vld [vmem:[%s3 + $0xc8] sm:$0xff]
  %v283 = vld [vmem:[%s3 + $0xd0] sm:$0xff]
  %v284 = vld [vmem:[%s3 + $0xd8] sm:$0xff]
  %v285 = vld [vmem:[%s3 + $0xe0] sm:$0xff]
  %v286 = vld [vmem:[%s3 + $0xe8] sm:$0xff]
  %v287 = vld [vmem:[%s3 + $0xf0] sm:$0xff]
  %v288 = vld [vmem:[%s3 + $0xf8] sm:$0xff]
  %v289 = vld [vmem:[%s4] sm:$0xf]
  %v291 = vlaneseq
  %v292 = vshrl.u32 %v291, 7
  %v293 = vsub.s32 0, %v292
  %v294 = vrot.slane %v289, %v293
  %v295 = vlaneseq
  %v296 = vshrl.u32 %v295, 7
  %v297 = vsub.s32 1, %v296
  %v298 = vrot.slane %v289, %v297
  %v299 = vlaneseq
  %v300 = vshrl.u32 %v299, 7
  %v301 = vsub.s32 2, %v300
  %v302 = vrot.slane %v289, %v301
  %v303 = vlaneseq
  %v304 = vshrl.u32 %v303, 7
  %v305 = vsub.s32 3, %v304
  %v306 = vrot.slane %v289, %v305
  %v343 = vunpack.c.l.b16 %v257
  %v344 = vunpack.c.h.b16 %v257
  %v345 = vunpack.c.l.b16 %v258
  %v346 = vunpack.c.h.b16 %v258
  %v347 = vunpack.c.l.b16 %v259
  %v348 = vunpack.c.h.b16 %v259
  %v349 = vunpack.c.l.b16 %v260
  %v350 = vunpack.c.h.b16 %v260
  %v351 = vunpack.c.l.b16 %v261
  %v352 = vunpack.c.h.b16 %v261
  %v353 = vunpack.c.l.b16 %v262
  %v354 = vunpack.c.h.b16 %v262
  %v355 = vunpack.c.l.b16 %v263
  %v356 = vunpack.c.h.b16 %v263
  %v357 = vunpack.c.l.b16 %v264
  %v358 = vunpack.c.h.b16 %v264
  %v359 = vunpack.c.l.b16 %v265
  %v360 = vunpack.c.h.b16 %v265
  %v361 = vunpack.c.l.b16 %v266
  %v362 = vunpack.c.h.b16 %v266
  %v363 = vunpack.c.l.b16 %v267
  %v364 = vunpack.c.h.b16 %v267
  %v365 = vunpack.c.l.b16 %v268
  %v366 = vunpack.c.h.b16 %v268
  %v367 = vunpack.c.l.b16 %v269
  %v368 = vunpack.c.h.b16 %v269
  %v369 = vunpack.c.l.b16 %v270
  %v370 = vunpack.c.h.b16 %v270
  %v371 = vunpack.c.l.b16 %v271
  %v372 = vunpack.c.h.b16 %v271
  %v373 = vunpack.c.l.b16 %v272
  %v374 = vunpack.c.h.b16 %v272
  %v375 = vunpack.c.l.b16 %v273
  %v376 = vunpack.c.h.b16 %v273
  %v377 = vunpack.c.l.b16 %v274
  %v378 = vunpack.c.h.b16 %v274
  %v379 = vunpack.c.l.b16 %v275
  %v380 = vunpack.c.h.b16 %v275
  %v381 = vunpack.c.l.b16 %v276
  %v382 = vunpack.c.h.b16 %v276
  %v383 = vunpack.c.l.b16 %v277
  %v384 = vunpack.c.h.b16 %v277
  %v385 = vunpack.c.l.b16 %v278
  %v386 = vunpack.c.h.b16 %v278
  %v387 = vunpack.c.l.b16 %v279
  %v388 = vunpack.c.h.b16 %v279
  %v389 = vunpack.c.l.b16 %v280
  %v390 = vunpack.c.h.b16 %v280
  %v391 = vunpack.c.l.b16 %v281
  %v392 = vunpack.c.h.b16 %v281
  %v393 = vunpack.c.l.b16 %v282
  %v394 = vunpack.c.h.b16 %v282
  %v395 = vunpack.c.l.b16 %v283
  %v396 = vunpack.c.h.b16 %v283
  %v397 = vunpack.c.l.b16 %v284
  %v398 = vunpack.c.h.b16 %v284
  %v399 = vunpack.c.l.b16 %v285
  %v400 = vunpack.c.h.b16 %v285
  %v401 = vunpack.c.l.b16 %v286
  %v402 = vunpack.c.h.b16 %v286
  %v403 = vunpack.c.l.b16 %v287
  %v404 = vunpack.c.h.b16 %v287
  %v405 = vunpack.c.l.b16 %v288
  %v406 = vunpack.c.h.b16 %v288
  %v407 = vpack.c.b16 %v347, %v343
  %v408 = vpack.c.b16 %v348, %v344
  %v409 = vpack.c.b16 %v349, %v345
  %v410 = vpack.c.b16 %v350, %v346
  %v411 = vpack.c.b16 %v355, %v351
  %v412 = vpack.c.b16 %v356, %v352
  %v413 = vpack.c.b16 %v357, %v353
  %v414 = vpack.c.b16 %v358, %v354
  %v415 = vpack.c.b16 %v363, %v359
  %v416 = vpack.c.b16 %v364, %v360
  %v417 = vpack.c.b16 %v365, %v361
  %v418 = vpack.c.b16 %v366, %v362
  %v419 = vpack.c.b16 %v371, %v367
  %v420 = vpack.c.b16 %v372, %v368
  %v421 = vpack.c.b16 %v373, %v369
  %v422 = vpack.c.b16 %v374, %v370
  %v423 = vpack.c.b16 %v379, %v375
  %v424 = vpack.c.b16 %v380, %v376
  %v425 = vpack.c.b16 %v381, %v377
  %v426 = vpack.c.b16 %v382, %v378
  %v427 = vpack.c.b16 %v387, %v383
  %v428 = vpack.c.b16 %v388, %v384
  %v429 = vpack.c.b16 %v389, %v385
  %v430 = vpack.c.b16 %v390, %v386
  %v431 = vpack.c.b16 %v395, %v391
  %v432 = vpack.c.b16 %v396, %v392
  %v433 = vpack.c.b16 %v397, %v393
  %v434 = vpack.c.b16 %v398, %v394
  %v435 = vpack.c.b16 %v403, %v399
  %v436 = vpack.c.b16 %v404, %v400
  %v437 = vpack.c.b16 %v405, %v401
  %v438 = vpack.c.b16 %v406, %v402
  %471 = vmatprep.subr.bf16.mxu0 %v408
  %472 = vmatpush1.bf16.msra.mxu0 %v407
  %473 = vmatprep.subr.bf16.mxu0 %v412
  %474 = vmatpush1.bf16.msra.mxu0 %v411
  %475 = vmatprep.subr.bf16.mxu0 %v416
  %476 = vmatpush1.bf16.msra.mxu0 %v415
  %477 = vmatprep.subr.bf16.mxu0 %v420
  %478 = vmatpush1.bf16.msra.mxu0 %v419
  %479 = vmatprep.subr.bf16.mxu0 %v424
  %480 = vmatpush1.bf16.msra.mxu0 %v423
  %481 = vmatprep.subr.bf16.mxu0 %v428
  %482 = vmatpush1.bf16.msra.mxu0 %v427
  %483 = vmatprep.subr.bf16.mxu0 %v432
  %484 = vmatpush1.bf16.msra.mxu0 %v431
  %485 = vmatprep.subr.bf16.mxu0 %v436
  %486 = vmatpush1.bf16.msra.mxu0 %v435
  %487 = vmatprep.subr.bf16.mxu0 0
  %488 = vmatpush1.bf16.msra.mxu0 0
  %489 = vmatprep.subr.bf16.mxu0 0
  %490 = vmatpush1.bf16.msra.mxu0 0
  %491 = vmatprep.subr.bf16.mxu0 0
  %492 = vmatpush1.bf16.msra.mxu0 0
  %493 = vmatprep.subr.bf16.mxu0 0
  %494 = vmatpush1.bf16.msra.mxu0 0
  %495 = vmatprep.subr.bf16.mxu0 0
  %496 = vmatpush1.bf16.msra.mxu0 0
  %497 = vmatprep.subr.bf16.mxu0 0
  %498 = vmatpush1.bf16.msra.mxu0 0
  %499 = vmatprep.subr.bf16.mxu0 0
  %500 = vmatpush1.bf16.msra.mxu0 0
  %501 = vmatprep.subr.bf16.mxu0 0
  %502 = vmatpush1.bf16.msra.mxu0 0
  %503 = vmatprep.mubr.bf16.mxu0 0
  %504 = vmatmul.mubr.bf16.gmra.mrb[0].mxu0 %v256
  %v505 = vpop.f32.mrb[0].mxu0
  %v506 = vadd.f32 %v294, %v505
  %v507 = vpop.f32.mrb[0].mxu0
  %v508 = vadd.f32 %v298, %v507
  %v509 = vpop.f32.mrb[0].mxu0
  %v510 = vadd.f32 %v294, %v509
  %v511 = vpop.f32.mrb[0].mxu0
  %v512 = vadd.f32 %v298, %v511
  %513 = vdwg.mxu0
  %514 = vmatprep.subr.bf16.mxu0 %v410
  %515 = vmatpush1.bf16.msra.mxu0 %v409
  %516 = vmatprep.subr.bf16.mxu0 %v414
  %517 = vmatpush1.bf16.msra.mxu0 %v413
  %518 = vmatprep.subr.bf16.mxu0 %v418
  %519 = vmatpush1.bf16.msra.mxu0 %v417
  %520 = vmatprep.subr.bf16.mxu0 %v422
  %521 = vmatpush1.bf16.msra.mxu0 %v421
  %522 = vmatprep.subr.bf16.mxu0 %v426
  %523 = vmatpush1.bf16.msra.mxu0 %v425
  %524 = vmatprep.subr.bf16.mxu0 %v430
  %525 = vmatpush1.bf16.msra.mxu0 %v429
  %526 = vmatprep.subr.bf16.mxu0 %v434
  %527 = vmatpush1.bf16.msra.mxu0 %v433
  %528 = vmatprep.subr.bf16.mxu0 %v438
  %529 = vmatpush1.bf16.msra.mxu0 %v437
  %530 = vmatprep.subr.bf16.mxu0 0
  %531 = vmatpush1.bf16.msra.mxu0 0
  %532 = vmatprep.subr.bf16.mxu0 0
  %533 = vmatpush1.bf16.msra.mxu0 0
  %534 = vmatprep.subr.bf16.mxu0 0
  %535 = vmatpush1.bf16.msra.mxu0 0
  %536 = vmatprep.subr.bf16.mxu0 0
  %537 = vmatpush1.bf16.msra.mxu0 0
  %538 = vmatprep.subr.bf16.mxu0 0
  %539 = vmatpush1.bf16.msra.mxu0 0
  %540 = vmatprep.subr.bf16.mxu0 0
  %541 = vmatpush1.bf16.msra.mxu0 0
  %542 = vmatprep.subr.bf16.mxu0 0
  %543 = vmatpush1.bf16.msra.mxu0 0
  %544 = vmatprep.subr.bf16.mxu0 0
  %545 = vmatpush1.bf16.msra.mxu0 0
  %546 = vmatprep.mubr.bf16.mxu0 0
  %547 = vmatmul.mubr.bf16.gmra.mrb[0].mxu0 %v256
  %v548 = vpop.f32.mrb[0].mxu0
  %v549 = vadd.f32 %v302, %v548
  %v550 = vpop.f32.mrb[0].mxu0
  %v551 = vadd.f32 %v306, %v550
  %v552 = vpop.f32.mrb[0].mxu0
  %v553 = vadd.f32 %v302, %v552
  %v554 = vpop.f32.mrb[0].mxu0
  %v555 = vadd.f32 %v306, %v554
  %556 = vdwg.mxu0
  %v557 = vmax.f32 %v506, 0.0
  %v558 = vmax.f32 %v508, 0.0
  %v559 = vmax.f32 %v549, 0.0
  %v560 = vmax.f32 %v551, 0.0
  %v561 = vmax.f32 %v510, 0.0
  %v562 = vmax.f32 %v512, 0.0
  %v563 = vmax.f32 %v553, 0.0
  %v564 = vmax.f32 %v555, 0.0
  %v565 = vmax.f32 %v557, %v558
  %v566 = vmax.f32 %v561, %v562
  %v567 = vmax.f32 %v559, %v560
  %v568 = vmax.f32 %v563, %v564
  %v569 = vmax.f32 %v565, %v567
  %v570 = vmax.f32 %v566, %v568
  %v571 = vpack.c.bf16 %v570, %v569
  %v572 = vld [vmem:[%s5] sm:$0xf]
  %v573 = vld [vmem:[%s5 + $0x4] sm:$0xf]
  %v574 = vld [vmem:[%s5 + $0x8] sm:$0xf]
  %v575 = vld [vmem:[%s5 + $0xc] sm:$0xf]
  %v576 = vld [vmem:[%s5 + $0x10] sm:$0xf]
  %v577 = vld [vmem:[%s5 + $0x14] sm:$0xf]
  %v578 = vld [vmem:[%s5 + $0x18] sm:$0xf]
  %v579 = vld [vmem:[%s5 + $0x1c] sm:$0xf]
  %v580 = vld [vmem:[%s5 + $0x20] sm:$0xf]
  %v581 = vld [vmem:[%s5 + $0x24] sm:$0xf]
  %v582 = vld [vmem:[%s5 + $0x28] sm:$0xf]
  %v583 = vld [vmem:[%s5 + $0x2c] sm:$0xf]
  %v584 = vld [vmem:[%s5 + $0x30] sm:$0xf]
  %v585 = vld [vmem:[%s5 + $0x34] sm:$0xf]
  %v586 = vld [vmem:[%s5 + $0x38] sm:$0xf]
  %v587 = vld [vmem:[%s5 + $0x3c] sm:$0xf]
  %v588 = vld [vmem:[%s6] sm:$0x1]
  %v590 = vlaneseq
  %v591 = vshrl.u32 %v590, 7
  %v592 = vsub.s32 0, %v591
  %v593 = vrot.slane %v588, %v592
  %v611 = vunpack.c.l.b16 %v572
  %v612 = vunpack.c.l.b16 %v573
  %v613 = vunpack.c.l.b16 %v574
  %v614 = vunpack.c.l.b16 %v575
  %v615 = vunpack.c.l.b16 %v576
  %v616 = vunpack.c.l.b16 %v577
  %v617 = vunpack.c.l.b16 %v578
  %v618 = vunpack.c.l.b16 %v579
  %v619 = vunpack.c.l.b16 %v580
  %v620 = vunpack.c.l.b16 %v581
  %v621 = vunpack.c.l.b16 %v582
  %v622 = vunpack.c.l.b16 %v583
  %v623 = vunpack.c.l.b16 %v584
  %v624 = vunpack.c.l.b16 %v585
  %v625 = vunpack.c.l.b16 %v586
  %v626 = vunpack.c.l.b16 %v587
  %v627 = vpack.c.b16 %v612, %v611
  %v628 = vpack.c.b16 %v614, %v613
  %v629 = vpack.c.b16 %v616, %v615
  %v630 = vpack.c.b16 %v618, %v617
  %v631 = vpack.c.b16 %v620, %v619
  %v632 = vpack.c.b16 %v622, %v621
  %v633 = vpack.c.b16 %v624, %v623
  %v634 = vpack.c.b16 %v626, %v625
  %643 = vmatprep.subr.bf16.mxu0 0
  %644 = vmatpush1.bf16.msra.mxu0 %v627
  %645 = vmatprep.subr.bf16.mxu0 0
  %646 = vmatpush1.bf16.msra.mxu0 %v628
  %647 = vmatprep.subr.bf16.mxu0 0
  %648 = vmatpush1.bf16.msra.mxu0 %v629
  %649 = vmatprep.subr.bf16.mxu0 0
  %650 = vmatpush1.bf16.msra.mxu0 %v630
  %651 = vmatprep.subr.bf16.mxu0 0
  %652 = vmatpush1.bf16.msra.mxu0 %v631
  %653 = vmatprep.subr.bf16.mxu0 0
  %654 = vmatpush1.bf16.msra.mxu0 %v632
  %655 = vmatprep.subr.bf16.mxu0 0
  %656 = vmatpush1.bf16.msra.mxu0 %v633
  %657 = vmatprep.subr.bf16.mxu0 0
  %658 = vmatpush1.bf16.msra.mxu0 %v634
  %659 = vmatprep.subr.bf16.mxu0 0
  %660 = vmatpush1.bf16.msra.mxu0 0
  %661 = vmatprep.subr.bf16.mxu0 0
  %662 = vmatpush1.bf16.msra.mxu0 0
  %663 = vmatprep.subr.bf16.mxu0 0
  %664 = vmatpush1.bf16.msra.mxu0 0
  %665 = vmatprep.subr.bf16.mxu0 0
  %666 = vmatpush1.bf16.msra.mxu0 0
  %667 = vmatprep.subr.bf16.mxu0 0
  %668 = vmatpush1.bf16.msra.mxu0 0
  %669 = vmatprep.subr.bf16.mxu0 0
  %670 = vmatpush1.bf16.msra.mxu0 0
  %671 = vmatprep.subr.bf16.mxu0 0
  %672 = vmatpush1.bf16.msra.mxu0 0
  %673 = vmatprep.subr.bf16.mxu0 0
  %674 = vmatpush1.bf16.msra.mxu0 0
  %675 = vmatprep.mubr.bf16.mxu0 0
  %676 = vmatmul.mubr.bf16.gmra.mrb[0].mxu0 %v571
  %v677 = vpop.f32.mrb[0].mxu0
  %v678 = vadd.f32 %v593, %v677
  %v679 = vpop.f32.mrb[0].mxu0
  %v680 = vpop.f32.mrb[0].mxu0
  %v681 = vadd.f32 %v593, %v680
  %v682 = vpop.f32.mrb[0].mxu0
  %683 = vdwg.mxu0
  %684 = vst [vmem:[%s7] sm:$0xff] %v678
  %685 = vst [vmem:[%s7 + $0x8] sm:$0xff] %v681
  // Predicated region
  $region30: #{_lambda_.1} parent=0 // pred_check
    _
  $region31: #{_lambda_.1} parent=0 // pred_check_branch
    %687 = sbr.rel (0) target = $region33
  $region32: #{_lambda_.1} parent=0 // pred_region
    _
  $region33: #{_lambda_.1} parent=0 // pred_fallthru
    _
  // Predicated region
  $region34: #{_lambda_.1} parent=0 // pred_check
    _
  $region35: #{_lambda_.1} parent=0 // pred_check_branch
    %689 = sbr.rel (0) target = $region37
  $region36: #{_lambda_.1} parent=0 // pred_region
    _
  $region37: #{_lambda_.1} parent=0 // pred_fallthru
    _

</llo_original>
